<compile_context>
chip_gen: v5e
topology: v5e:2x2
jax: 0.10.0
libtpu: 0.0.40
codegen_flags: <defaults>
</compile_context>

<pallas_src>
import functools

import jax
import jax.numpy as jnp
from jax.experimental import pallas as pl
from jax.experimental.pallas import tpu as pltpu

_LANES = 128
_SUBLANES = 8
_TILE_ROWS = 512                    # (512,128) f32 block = 256 KiB / input / buffer
_SMALL_BYTES = 2 * 1024 * 1024      # <= 2 MiB (f32-equivalent) -> single-shot path


# ---------------------------- kernels ----------------------------
def _mse_small_kernel(a_ref, b_ref, out_ref, *, inv_n):
    # Whole (small) arrays resident in VMEM; scalar result to SMEM.
    a = a_ref[...].astype(jnp.float32)
    b = b_ref[...].astype(jnp.float32)
    d = a - b
    out_ref[0, 0] = jnp.sum(d * d) * inv_n


def _mse_tiled_kernel(a_ref, b_ref, out_ref, acc_ref, *, inv_n):
    # a_ref/b_ref: (TILE_ROWS, 128) double-buffered tiles.
    # acc_ref: resident (8,128) f32 accumulator. out_ref: (1,1) SMEM scalar.
    i = pl.program_id(0)

    @pl.when(i == 0)
    def _():
        acc_ref[...] = jnp.zeros_like(acc_ref)

    a = a_ref[...].astype(jnp.float32)
    b = b_ref[...].astype(jnp.float32)
    d = a - b
    sq = d * d
    # VALU-only partial reduction: collapse (TILE_ROWS,128) onto the (8,128)
    # accumulator with full-vreg adds; no XLU cross-lane work per tile.
    acc_ref[...] += jnp.sum(sq.reshape(-1, _SUBLANES, _LANES), axis=0)

    @pl.when(i == pl.num_programs(0) - 1)
    def _():
        # Single cross-lane reduce + scale, once per kernel.
        out_ref[0, 0] = jnp.sum(acc_ref[...]) * inv_n


# ---------------------------- wrapper ----------------------------
def _flatten_lane_dense(x, multiple):
    """Flatten, zero-pad to a multiple of `multiple` elems, reshape to (rows,128)."""
    flat = x.reshape(-1)
    n = flat.shape[0]
    padded = ((n + multiple - 1) // multiple) * multiple
    if padded != n:
        flat = jnp.pad(flat, (0, padded - n))
    return flat.reshape(padded // _LANES, _LANES)


def latent_loss(base_feature, decoded_feature):
    """MSELoss(reduction='mean') between two equally-shaped feature tensors."""
    assert base_feature.shape == decoded_feature.shape, (
        base_feature.shape, decoded_feature.shape)
    n_elem = base_feature.size
    inv_n = 1.0 / float(n_elem)

    # Decision based on the f32 footprint the kernel actually works in.
    if n_elem * 4 <= _SMALL_BYTES:
        # Single-shot path: pad to a multiple of 8*128 so every vreg is full.
        a2 = _flatten_lane_dense(base_feature, _SUBLANES * _LANES)
        b2 = _flatten_lane_dense(decoded_feature, _SUBLANES * _LANES)
        out = pl.pallas_call(
            functools.partial(_mse_small_kernel, inv_n=inv_n),
            out_shape=jax.ShapeDtypeStruct((1, 1), jnp.float32),
            in_specs=[pl.BlockSpec(memory_space=pltpu.MemorySpace.VMEM),
                      pl.BlockSpec(memory_space=pltpu.MemorySpace.VMEM)],
            out_specs=pl.BlockSpec(memory_space=pltpu.MemorySpace.SMEM),
        )(a2, b2)
        return out[0, 0]

    # Row-tiled streaming path: pad to a multiple of one full tile so every
    # grid step sees a full (TILE_ROWS, 128) block (padded diffs are zero).
    tile_elems = _TILE_ROWS * _LANES
    a2 = _flatten_lane_dense(base_feature, tile_elems)
    b2 = _flatten_lane_dense(decoded_feature, tile_elems)
    num_tiles = a2.shape[0] // _TILE_ROWS

    out = pl.pallas_call(
        functools.partial(_mse_tiled_kernel, inv_n=inv_n),
        out_shape=jax.ShapeDtypeStruct((1, 1), jnp.float32),
        grid_spec=pltpu.PrefetchScalarGridSpec(
            num_scalar_prefetch=0,
            grid=(num_tiles,),
            in_specs=[pl.BlockSpec((_TILE_ROWS, _LANES), lambda i: (i, 0)),
                      pl.BlockSpec((_TILE_ROWS, _LANES), lambda i: (i, 0))],
            out_specs=pl.BlockSpec(memory_space=pltpu.MemorySpace.SMEM),
            scratch_shapes=[pltpu.VMEM((_SUBLANES, _LANES), jnp.float32)],
        ),
        compiler_params=pltpu.CompilerParams(
            dimension_semantics=("arbitrary",)),
    )(a2, b2)
    return out[0, 0]


# ---------------- pure-JAX reference (correctness check) ----------------
def _ref_latent_loss(a, b):
    return jnp.mean((a.astype(jnp.float32) - b.astype(jnp.float32)) ** 2)


if __name__ == "__main__":
    key = jax.random.PRNGKey(0)
    k1, k2, k3, k4, k5, k6 = jax.random.split(key, 6)

    # 1) Tiny latent feature (single-shot path): batch=2, snippets=8, channels=32.
    N, S, C = 2, 8, 32
    base = jax.random.normal(k1, (N, S, C), dtype=jnp.float32)
    dec = base + 0.1 * jax.random.normal(k2, (N, S, C), dtype=jnp.float32)
    loss = jax.block_until_ready(latent_loss(base, dec))
    ref = _ref_latent_loss(base, dec)
    assert jnp.isfinite(loss), "loss is not finite"
    assert jnp.allclose(loss, ref, rtol=1e-5, atol=1e-6), (loss, ref)

    # 2) Odd, non-multiple-of-128 size: exercises the zero-padding path.
    base_o = jax.random.normal(k3, (2, 7, 33), dtype=jnp.float32)
    dec_o = base_o + 0.05 * jax.random.normal(k4, (2, 7, 33), dtype=jnp.float32)
    loss_o = jax.block_until_ready(latent_loss(base_o, dec_o))
    ref_o = _ref_latent_loss(base_o, dec_o)
    assert jnp.allclose(loss_o, ref_o, rtol=1e-5, atol=1e-6), (loss_o, ref_o)

    # 3) Larger bf16 feature map: exercises the row-tiled streaming path.
    base_l = jax.random.normal(k5, (4, 256, 768), dtype=jnp.bfloat16)
    dec_l = (base_l.astype(jnp.float32)
             + 0.1 * jax.random.normal(k6, (4, 256, 768), dtype=jnp.float32)
             ).astype(jnp.bfloat16)
    loss_l = jax.block_until_ready(latent_loss(base_l, dec_l))
    ref_l = _ref_latent_loss(base_l, dec_l)
    assert jnp.allclose(loss_l, ref_l, rtol=1e-4, atol=1e-5), (loss_l, ref_l)

    print("KERNEL_OK")
</pallas_src>

<mosaic_0001>
module attributes {stable_mosaic.version = 11 : i64} {
  func.func @_mse_small_kernel(%arg0: memref<8x128xf32, #tpu.memory_space<vmem>>, %arg1: memref<8x128xf32, #tpu.memory_space<vmem>>, %arg2: memref<1x1xf32, #tpu.memory_space<smem>>) attributes {dimension_semantics = [], scalar_prefetch = 0 : i64, scratch_operands = 0 : i64, tpu.core_type = #tpu.core_type<tc>} {
    %c0 = arith.constant 0 : index
    %c0_0 = arith.constant 0 : index
    %0 = vector.load %arg0[%c0, %c0_0] : memref<8x128xf32, #tpu.memory_space<vmem>>, vector<8x128xf32>
    %c0_1 = arith.constant 0 : index
    %c0_2 = arith.constant 0 : index
    %1 = vector.load %arg1[%c0_1, %c0_2] : memref<8x128xf32, #tpu.memory_space<vmem>>, vector<8x128xf32>
    %2 = arith.subf %0, %1 : vector<8x128xf32>
    %3 = arith.mulf %2, %2 : vector<8x128xf32>
    %4 = vector.shape_cast %3 : vector<8x128xf32> to vector<1x8x128xf32>
    %cst = arith.constant dense<0.000000e+00> : vector<1xf32>
    %5 = vector.multi_reduction <add>, %4, %cst [1, 2] : vector<1x8x128xf32> to vector<1xf32>
    %6 = vector.shape_cast %5 : vector<1xf32> to vector<1x1x1xf32>
    %7 = vector.extract %6[0, 0, 0] : f32 from vector<1x1x1xf32>
    %cst_3 = arith.constant 0.001953125 : f32
    %8 = arith.mulf %7, %cst_3 : f32
    %c0_4 = arith.constant 0 : index
    %c0_5 = arith.constant 0 : index
    %9 = memref.load %arg2[%c0_4, %c0_5] : memref<1x1xf32, #tpu.memory_space<smem>>
    memref.store %8, %arg2[%c0_4, %c0_5] : memref<1x1xf32, #tpu.memory_space<smem>>
    return
  }
}

</mosaic_0001>

<llo_original>
// kernel: tpu_custom_call.1
$region0: #{tpu_custom_call.1}
  #allocation0 [shape = 'u32[]', space=smem, size = 0x4, offset = 0x4, fixed_abs, tag = 'smem constant byte address 0x4 - core index']
  #allocation1 [shape = 'u32[72,128]{1,0:T(1,128)}', space=vmem, size = 0x9000, scoped, tag = 'internal scratch']
  %s0 = inlined_call_operand.hbm [shape: f32[8,128], index: 0, kind: input, shape index: {}]
  %s1 = inlined_call_operand.hbm [shape: f32[8,128], index: 1, kind: input, shape index: {}]
  %s2 = inlined_call_operand.hbm [shape: f32[1,1], index: 2, kind: output, shape index: {}]
  %s3 = sld [smem:[#allocation0]]
  $region26: #{tpu_custom_call.1} parent=0
    _
  %s5 = ssub.s32 1, %s3
  %s6 = scalar_select 0, %s5, %s3
  $region1: #{tpu_custom_call.1} parent=0
    #allocation2 [shape = 'u8[4096]{0}', space=vmem, size = 0x1000, scoped, tag = 'input window, operand 0, single buffered']
    #allocation3 [shape = 's32[1]{0}', space=sflag, size = 0x4, scoped, tag = 'scoped memory for tpu_custom_call.1']
    #allocation4 [shape = 's32[1]{0}', space=sflag, size = 0x4, scoped, tag = 'scoped memory for tpu_custom_call.1']
    #allocation5 [shape = 'u8[4096]{0}', space=vmem, size = 0x1000, scoped, tag = 'input window, operand 1, single buffered']
    #allocation6 [shape = 's32[1]{0}', space=sflag, size = 0x4, scoped, tag = 'scoped memory for tpu_custom_call.1']
    #allocation7 [shape = 'u8[512]{0}', space=smem, size = 0x200, scoped, tag = 'output window, operand 0, single buffered']
    %7 = vsyncpa [#allocation3], 0
    %8 = vsyncpa [#allocation6], 0
    %9 = vsyncpa [#allocation4], 0
    // Predicated region
    $region2: #{tpu_custom_call.1} parent=1 // pred_check
      _
    $region3: #{tpu_custom_call.1} parent=1 // pred_check_branch
      %11 = sbr.rel (0) target = $region5
    $region4: #{tpu_custom_call.1} parent=1 // pred_region
      %13 = vsyncadd [#allocation3], 0
      %s15 = sshll.u32 %s0, 4
      %s16 = int_to_ptr.hbm [resolvable:$true] %s15
      %s17 = sshll.u32 [#allocation2], 4
      %s18 = int_to_ptr.vmem [resolvable:$true] %s17
      %20 = dma.hbm_to_vmem [thread:$0]  %s16, 128, %s18, [#allocation3]
    $region5: #{tpu_custom_call.1} parent=1 // pred_fallthru
      _
    // Predicated region
    $region6: #{tpu_custom_call.1} parent=1 // pred_check
      _
    $region7: #{tpu_custom_call.1} parent=1 // pred_check_branch
      %22 = sbr.rel (0) target = $region9
    $region8: #{tpu_custom_call.1} parent=1 // pred_region
      %24 = vsyncadd [#allocation6], 0
      %s26 = sshll.u32 %s1, 4
      %s27 = int_to_ptr.hbm [resolvable:$true] %s26
      %s28 = sshll.u32 [#allocation5], 4
      %s29 = int_to_ptr.vmem [resolvable:$true] %s28
      %31 = dma.hbm_to_vmem [thread:$0]  %s27, 128, %s29, [#allocation6]
    $region9: #{tpu_custom_call.1} parent=1 // pred_fallthru
      _
    // Predicated region
    $region10: #{tpu_custom_call.1} parent=1 // pred_check
      _
    $region11: #{tpu_custom_call.1} parent=1 // pred_check_branch
      %33 = sbr.rel (0) target = $region13
    $region12: #{tpu_custom_call.1} parent=1 // pred_region
      %35 = dma.done [#allocation3], 128
    $region13: #{tpu_custom_call.1} parent=1 // pred_fallthru
      _
    // Predicated region
    $region14: #{tpu_custom_call.1} parent=1 // pred_check
      _
    $region15: #{tpu_custom_call.1} parent=1 // pred_check_branch
      %37 = sbr.rel (0) target = $region17
    $region16: #{tpu_custom_call.1} parent=1 // pred_region
      %39 = dma.done [#allocation6], 128
    $region17: #{tpu_custom_call.1} parent=1 // pred_fallthru
      _
    %v40 = vld [vmem:[#allocation2] sm:$0xff]
    %v41 = vld [vmem:[#allocation5] sm:$0xff]
    %v42 = vsub.f32 %v40, %v41
    %v43 = vmul.f32 %v42, %v42
    %44 = vadd.xlane.f32.xlu0 %v43
    %v45 = vpop.xlane.xlu0 %44
    %v46 = vrot.slane %v45, 4
    %v47 = vadd.f32 %v45, %v46
    %v48 = vrot.slane %v47, 2
    %v49 = vadd.f32 %v47, %v48
    %v50 = vrot.slane %v49, 1
    %v51 = vadd.f32 %v49, %v50
    %s52 = vtos %v51
    %s53 = smul.f32 %s52, 0.001953125
    %s54 = scalar_lea.smem [#allocation7], 0
    %55 = sst [smem:[%s54]] %s53
    // Predicated region
    $region18: #{tpu_custom_call.1} parent=1 // pred_check
      _
    $region19: #{tpu_custom_call.1} parent=1 // pred_check_branch
      %57 = sbr.rel (0) target = $region21
    $region20: #{tpu_custom_call.1} parent=1 // pred_region
      %59 = vsyncadd [#allocation4], 0
      %s61 = sshll.u32 %s2, 4
      %s62 = int_to_ptr.hbm [resolvable:$true] %s61
      %64 = dma.smem_to_hbm [#allocation7], 16, %s62, [#allocation4]
    $region21: #{tpu_custom_call.1} parent=1 // pred_fallthru
      _
    // Predicated region
    $region22: #{tpu_custom_call.1} parent=1 // pred_check
      _
    $region23: #{tpu_custom_call.1} parent=1 // pred_check_branch
      %66 = sbr.rel (0) target = $region25
    $region24: #{tpu_custom_call.1} parent=1 // pred_region
      %68 = dma.done [#allocation4], 16
    $region25: #{tpu_custom_call.1} parent=1 // pred_fallthru
      _
    %69 = sfence
    %70 = vsyncpa [#allocation3], 1
    %71 = vsyncpa [#allocation6], 1
    %72 = vsyncpa [#allocation4], 1

</llo_original>
